<compile_context>
chip_gen: v5e
topology: v5e:2x2
jax: 0.10.0
libtpu: 0.0.40
codegen_flags: <defaults>
</compile_context>

<pallas_src>
import functools
import math

import jax
import jax.numpy as jnp
from jax.experimental import pallas as pl
from jax.experimental.pallas import tpu as pltpu


# ---------------------------------------------------------------------------
# Hardware introspection (generation-aware tiling / VMEM budgets).
# ---------------------------------------------------------------------------

def _vmem_capacity_bytes() -> int:
    try:
        return int(pltpu.get_tpu_info().vmem_capacity_bytes)
    except Exception:
        return 64 * 1024 * 1024          # conservative (v7x-sized) fallback


def _num_tensorcores() -> int:
    """TensorCores reachable through one Pallas 'parallel' grid axis."""
    try:
        info = pltpu.get_tpu_info()
        for attr in ("num_cores", "core_count", "num_tensorcores",
                     "tensorcores_per_chip"):
            val = getattr(info, attr, None)
            if isinstance(val, int) and val > 0:
                return val
    except Exception:
        pass
    try:
        kind = (jax.devices()[0].device_kind or "").lower()
    except Exception:
        kind = ""
    if "lite" in kind or "v5e" in kind or "v6e" in kind or "v6" in kind:
        return 1                          # v5e / v6e: one TensorCore per chip
    if "7" in kind or "v4" in kind or "v5p" in kind:
        return 2                          # v7x and v4/v5p megacore: two
    return 1


# ---------------------------------------------------------------------------
# Tiling plan.
# ---------------------------------------------------------------------------

def _plan(rows, width, itemsize, with_labels, num_splits, budget_override):
    """Pick block sizes / grid layout for a (rows, width) streaming reduction."""
    vmem_cap = _vmem_capacity_bytes()
    num_cores = _num_tensorcores()
    budget = budget_override or min(int(vmem_cap * 0.3), 40 * 1024 * 1024)

    sub = max(8, 32 // itemsize)          # dtype-native sublane multiple
    label_row = 128 * 4 if with_labels else 0    # (tm,1) i32 pads to 128 lanes

    # Column tiling only if even `sub` double-buffered rows overflow the budget.
    if 2 * sub * (width * itemsize + label_row) <= budget:
        tn, col_tiles, mask_cols = width, 1, False
    else:
        tn = max(128, (budget // (2 * sub * itemsize)) // 128 * 128)
        if tn >= width:
            tn, col_tiles, mask_cols = width, 1, False
        else:
            col_tiles = pl.cdiv(width, tn)
            mask_cols = (width % tn) != 0

    bytes_per_row = 2 * (tn * itemsize + label_row)      # double-buffered
    rows_fit = max(sub, (budget // bytes_per_row) // sub * sub)
    if rows < 8:
        tm = rows                          # full-dim block (tiny input)
    else:
        step = sub if rows >= sub else 8
        tm = max(8, min(rows_fit, (rows // step) * step))
    row_tiles = pl.cdiv(rows, tm)

    if num_splits is None:                 # engage both TCs on v7x / megacore
        num_splits = 2 if num_cores >= 2 else 1
    n_splits = max(1, min(num_splits, row_tiles))
    tiles_per_split = pl.cdiv(row_tiles, n_splits)

    vmem_limit = int(min(vmem_cap * 0.9, vmem_cap - (2 << 20)))
    return dict(tm=tm, tn=tn, row_tiles=row_tiles, col_tiles=col_tiles,
                mask_cols=mask_cols, n_splits=n_splits, tps=tiles_per_split,
                vmem_limit=vmem_limit)


# ---------------------------------------------------------------------------
# Kernels.
# ---------------------------------------------------------------------------

def _masked_sum_kernel(x_ref, out_ref, acc_ref, *, valid_rows, total_cols,
                       tiles_per_split, mask_cols):
    """acc += sum(x) over the valid window; flush one scalar per split."""
    p = pl.program_id(0)          # parallel split (TensorCore axis)
    t = pl.program_id(1)          # row tile within the split (reduction axis)
    j = pl.program_id(2)          # column tile (reduction axis)
    n_col = pl.num_programs(2)
    is_first = jnp.logical_and(t == 0, j == 0)
    is_last = jnp.logical_and(t == tiles_per_split - 1, j == n_col - 1)

    @pl.when(is_first)
    def _():
        acc_ref[...] = jnp.zeros_like(acc_ref)
        out_ref[...] = jnp.zeros_like(out_ref)

    tm, tn = x_ref.shape
    gt = p * tiles_per_split + t            # global row tile (may overhang)
    row_ok = (gt * tm + jax.lax.broadcasted_iota(jnp.int32, (tm, 1), 0)
              ) < valid_rows                # (tm,1); overhang tile -> all False
    ok = row_ok
    if mask_cols:
        col_ok = (j * tn + jax.lax.broadcasted_iota(jnp.int32, (1, tn), 1)
                  ) < total_cols
        ok = jnp.logical_and(row_ok, col_ok)
    # select (NOT multiply): garbage/NaN in padded edge blocks is never touched.
    x = jnp.where(ok, x_ref[...].astype(jnp.float32), 0.0)
    # Vector accumulate: VALU adds per step; one cross-lane reduce per split.
    acc_ref[...] += jnp.sum(x, axis=0, keepdims=True)

    @pl.when(is_last)
    def _():
        out_ref[...] = jnp.sum(acc_ref[...], keepdims=True)


def _weighted_sum_kernel(x_ref, y_ref, out_ref, acc_ref, *, t_true, t_other,
                         valid_rows, total_cols, tiles_per_split, mask_cols):
    """acc += sum(coeff * x): coeff = t_true on the label column, else t_other.

    Single fused reduction (no separate bulk + true-class sweeps)."""
    p = pl.program_id(0)
    t = pl.program_id(1)
    j = pl.program_id(2)
    n_col = pl.num_programs(2)
    is_first = jnp.logical_and(t == 0, j == 0)
    is_last = jnp.logical_and(t == tiles_per_split - 1, j == n_col - 1)

    @pl.when(is_first)
    def _():
        acc_ref[...] = jnp.zeros_like(acc_ref)
        out_ref[...] = jnp.zeros_like(out_ref)

    tm, tn = x_ref.shape
    gt = p * tiles_per_split + t
    row_ok = (gt * tm + jax.lax.broadcasted_iota(jnp.int32, (tm, 1), 0)
              ) < valid_rows
    ok = row_ok
    if mask_cols:
        col_ok = (j * tn + jax.lax.broadcasted_iota(jnp.int32, (1, tn), 1)
                  ) < total_cols
        ok = jnp.logical_and(row_ok, col_ok)

    cls = jax.lax.broadcasted_iota(jnp.int32, (tm, tn), 1)
    is_true = cls == (y_ref[...] - j * tn)          # shift the label, not iota
    w = jnp.where(is_true, jnp.float32(t_true), jnp.float32(t_other))
    x = jnp.where(ok, x_ref[...].astype(jnp.float32), 0.0)
    acc_ref[...] += jnp.sum(w * x, axis=0, keepdims=True)

    @pl.when(is_last)
    def _():
        out_ref[...] = jnp.sum(acc_ref[...], keepdims=True)


# ---------------------------------------------------------------------------
# pallas_call wrapper shared by both paths.
# ---------------------------------------------------------------------------

def _run_reduction(kernel, arrays, plan, itemsize, total_elems, with_labels):
    row_tiles, tps = plan["row_tiles"], plan["tps"]
    tm, tn = plan["tm"], plan["tn"]

    def x_map(p, t, j):
        # Clamp so the overhang steps of an uneven split stay in bounds; the
        # in-kernel row mask zeroes the duplicated tile's contribution.
        return (jnp.minimum(p * tps + t, row_tiles - 1), j)

    in_specs = [pl.BlockSpec((tm, tn), x_map)]
    if with_labels:
        def y_map(p, t, j):
            return (jnp.minimum(p * tps + t, row_tiles - 1), 0)
        in_specs.append(pl.BlockSpec((tm, 1), y_map))

    partials = pl.pallas_call(
        kernel,
        out_shape=jax.ShapeDtypeStruct((plan["n_splits"], 1), jnp.float32),
        grid_spec=pltpu.PrefetchScalarGridSpec(
            num_scalar_prefetch=0,
            grid=(plan["n_splits"], tps, plan["col_tiles"]),
            in_specs=in_specs,
            out_specs=pl.BlockSpec((1, 1), lambda p, t, j: (p, 0)),
            scratch_shapes=[pltpu.VMEM((1, tn), jnp.float32)],
        ),
        compiler_params=pltpu.CompilerParams(
            dimension_semantics=("parallel", "arbitrary", "arbitrary"),
            vmem_limit_bytes=plan["vmem_limit"],
        ),
        cost_estimate=pl.CostEstimate(
            flops=int((4 if with_labels else 2) * total_elems),
            transcendentals=0,
            bytes_accessed=int(total_elems * itemsize + plan["n_splits"] * 4),
        ),
    )(*arrays)
    return jnp.sum(partials)


# ---------------------------------------------------------------------------
# Public entry point: KLDivLossWithTarget.forward.
# ---------------------------------------------------------------------------

def kl_div_with_target(log_probs: jax.Array, y_true: jax.Array,
                       epsilon: float = 0.05, *,
                       num_splits: int | None = None,
                       vmem_budget_bytes: int | None = None) -> jax.Array:
    """log_probs: (B, C) float log-probabilities; y_true: (B,) int labels."""
    B, C = log_probs.shape
    if C < 2:
        raise ValueError("num_classes must be >= 2")
    t_true = 1.0 / C + epsilon
    t_other = 1.0 / C - epsilon / (C - 1)
    if t_other <= 0.0:
        raise ValueError("epsilon too large: off-class target probability <= 0")
    # Constant sum(target * log(target)) per row, folded out of the kernel.
    h_const = t_true * math.log(t_true) + (C - 1) * t_other * math.log(t_other)

    itemsize = jnp.dtype(log_probs.dtype).itemsize
    lane_aligned = (C % 128 == 0) or (C >= 1024)

    if lane_aligned:
        # Natural (B, C) layout is lane-dense enough: single fused pass that
        # directly yields sum(target * log_probs) with labels as i32 blocks.
        plan = _plan(B, C, itemsize, True, num_splits, vmem_budget_bytes)
        y2d = y_true.astype(jnp.int32).reshape(B, 1)
        kernel = functools.partial(
            _weighted_sum_kernel, t_true=t_true, t_other=t_other,
            valid_rows=B, total_cols=C, tiles_per_split=plan["tps"],
            mask_cols=plan["mask_cols"])
        weighted = _run_reduction(kernel, (log_probs, y2d), plan, itemsize,
                                  B * C, with_labels=True)
    else:
        # Small / odd C: flatten to a lane-dense (rows, 128) slab, pure masked
        # sum in the kernel; true-class term is a tiny B-element wrapper gather.
        flat = log_probs.reshape(-1)
        total = B * C
        n_main = (total // 128) * 128
        rows = n_main // 128
        tail = (jnp.sum(flat[n_main:].astype(jnp.float32))
                if n_main < total else jnp.float32(0.0))
        if rows == 0:
            # TODO(synk): degenerate (< 128 element) inputs skip the kernel.
            s_main = jnp.float32(0.0)
        else:
            main = flat[:n_main].reshape(rows, 128)
            plan = _plan(rows, 128, itemsize, False, num_splits,
                         vmem_budget_bytes)
            kernel = functools.partial(
                _masked_sum_kernel, valid_rows=rows, total_cols=128,
                tiles_per_split=plan["tps"], mask_cols=False)
            s_main = _run_reduction(kernel, (main,), plan, itemsize, n_main,
                                    with_labels=False)
        s_all = s_main + tail
        y2d = y_true.astype(jnp.int32).reshape(B, 1)
        s_true = jnp.sum(
            jnp.take_along_axis(log_probs, y2d, axis=1).astype(jnp.float32))
        weighted = (jnp.float32(t_other) * s_all
                    + jnp.float32(t_true - t_other) * s_true)

    return jnp.float32(h_const) - weighted / jnp.float32(B)


# ---------------------------------------------------------------------------
# Pure-JAX reference and self-test.
# ---------------------------------------------------------------------------

def _reference(log_probs, y_true, num_classes, epsilon=0.05):
    B = log_probs.shape[0]
    lp = log_probs.astype(jnp.float32)
    onehot = jax.nn.one_hot(y_true, num_classes, dtype=jnp.float32)
    target = (jnp.full((B, num_classes), 1.0 / num_classes, jnp.float32)
              + onehot * epsilon
              - (1.0 - onehot) * (epsilon / (num_classes - 1)))
    return jnp.sum(target * (jnp.log(target) - lp)) / B


if __name__ == "__main__":
    keys = jax.random.split(jax.random.PRNGKey(0), 10)

    def make(B, C, kq, ky, dtype=jnp.float32):
        lp = jax.nn.log_softmax(
            jax.random.normal(keys[kq], (B, C), jnp.float32), axis=1)
        y = jax.random.randint(keys[ky], (B,), 0, C, dtype=jnp.int32)
        return lp.astype(dtype), y

    # 1) module-sized example (batch=8, num_classes=16): lane-dense flat path.
    lp, y = make(8, 16, 0, 1)
    loss = jax.block_until_ready(kl_div_with_target(lp, y, epsilon=0.05))
    ref = _reference(lp, y, 16)
    assert jnp.allclose(loss, ref, atol=2e-5, rtol=1e-4), (loss, ref)

    # 2) small C, many row tiles, forced 2-way split with an odd tile count
    #    (exercises the clamped / masked overhang tile).
    lp, y = make(840, 16, 2, 3)
    out = jax.block_until_ready(kl_div_with_target(
        lp, y, num_splits=2, vmem_budget_bytes=16 * 1024))
    assert jnp.allclose(out, _reference(lp, y, 16), atol=1e-4, rtol=1e-3), out

    # 3) lane-aligned C: natural layout, fused in-kernel target weighting.
    lp, y = make(96, 256, 4, 5)
    out = jax.block_until_ready(kl_div_with_target(
        lp, y, num_splits=2, vmem_budget_bytes=64 * 1024))
    assert jnp.allclose(out, _reference(lp, y, 256), atol=1e-4, rtol=1e-3), out

    # 4) wide C with column tiling and a partial (masked) last column tile.
    lp, y = make(32, 1152, 6, 7)
    out = jax.block_until_ready(kl_div_with_target(
        lp, y, num_splits=2, vmem_budget_bytes=32 * 1024))
    assert jnp.allclose(out, _reference(lp, y, 1152), atol=1e-4, rtol=1e-3), out

    # 5) bf16 input (dtype-native sublane packing, f32 accumulation).
    lp, y = make(512, 16, 8, 9, dtype=jnp.bfloat16)
    out = jax.block_until_ready(kl_div_with_target(lp, y))
    assert jnp.allclose(out, _reference(lp, y, 16), atol=5e-3, rtol=5e-3), out

    print("KERNEL_OK")
</pallas_src>

<mosaic_0001>
module attributes {stable_mosaic.version = 11 : i64} {
  func.func @_masked_sum_kernel(%arg0: i32, %arg1: i32, %arg2: i32, %arg3: memref<1x128xf32, #tpu.memory_space<vmem>>, %arg4: memref<1x1xf32, #tpu.memory_space<vmem>>, %arg5: memref<1x128xf32, #tpu.memory_space<vmem>>) attributes {dimension_semantics = [#tpu.dimension_semantics<parallel>, #tpu.dimension_semantics<arbitrary>, #tpu.dimension_semantics<arbitrary>], iteration_bounds = array<i64: 1, 1, 1>, scalar_prefetch = 0 : i64, scratch_operands = 1 : i64, tpu.core_type = #tpu.core_type<tc>, window_params = [{transform_indices = @transform_0, window_bounds = array<i64: 1, 128>}, {transform_indices = @transform_1, window_bounds = array<i64: 1, 1>}]} {
    %c0_i32 = arith.constant 0 : i32
    %0 = arith.cmpi eq, %arg1, %c0_i32 : i32
    %c0_i32_0 = arith.constant 0 : i32
    %1 = arith.cmpi eq, %arg2, %c0_i32_0 : i32
    %2 = arith.andi %0, %1 : i1
    %c0_i32_1 = arith.constant 0 : i32
    %3 = arith.cmpi eq, %arg1, %c0_i32_1 : i32
    %c0_i32_2 = arith.constant 0 : i32
    %4 = arith.cmpi eq, %arg2, %c0_i32_2 : i32
    %5 = arith.andi %3, %4 : i1
    %6 = arith.extui %2 : i1 to i32
    %c0_i32_3 = arith.constant 0 : i32
    %7 = arith.cmpi ne, %6, %c0_i32_3 : i32
    scf.if %7 {
      %cst_13 = arith.constant 0.000000e+00 : f32
      %28 = vector.broadcast %cst_13 : f32 to vector<1x128xf32>
      %c0_14 = arith.constant 0 : index
      %c0_15 = arith.constant 0 : index
      %29 = vector.load %arg5[%c0_14, %c0_15] : memref<1x128xf32, #tpu.memory_space<vmem>>, vector<1x128xf32>
      tpu.vector_store %arg5[%c0_14, %c0_15], %28 {strides = array<i32>} : memref<1x128xf32, #tpu.memory_space<vmem>>, vector<1x128xf32>,
      %cst_16 = arith.constant 0.000000e+00 : f32
      %30 = vector.broadcast %cst_16 : f32 to vector<1x1xf32>
      %c0_17 = arith.constant 0 : index
      %c0_18 = arith.constant 0 : index
      %31 = vector.load %arg4[%c0_17, %c0_18] : memref<1x1xf32, #tpu.memory_space<vmem>>, vector<1x1xf32>
      tpu.vector_store %arg4[%c0_17, %c0_18], %30 {strides = array<i32>} : memref<1x1xf32, #tpu.memory_space<vmem>>, vector<1x1xf32>,
    } else {
    }
    %c1_i32 = arith.constant 1 : i32
    %8 = arith.muli %arg0, %c1_i32 : i32
    %9 = arith.addi %8, %arg1 : i32
    %c1_i32_4 = arith.constant 1 : i32
    %10 = arith.muli %9, %c1_i32_4 : i32
    %11 = tpu.iota {dimensions = array<i32: 0>} : vector<1x1xi32>
    %12 = vector.broadcast %10 : i32 to vector<1x1xi32>
    %13 = arith.addi %12, %11 : vector<1x1xi32>
    %c1_i32_5 = arith.constant 1 : i32
    %14 = vector.broadcast %c1_i32_5 : i32 to vector<1x1xi32>
    %15 = arith.cmpi slt, %13, %14 : vector<1x1xi32>
    %c0 = arith.constant 0 : index
    %c0_6 = arith.constant 0 : index
    %16 = vector.load %arg3[%c0, %c0_6] : memref<1x128xf32, #tpu.memory_space<vmem>>, vector<1x128xf32>
    %cst = arith.constant 0.000000e+00 : f32
    %17 = vector.shape_cast %15 : vector<1x1xi1> to vector<1x1xi1>
    %18 = vector.broadcast %17 : vector<1x1xi1> to vector<1x128xi1>
    %19 = vector.broadcast %cst : f32 to vector<1x128xf32>
    %20 = arith.select %18, %16, %19 : vector<1x128xi1>, vector<1x128xf32>
    %c0_7 = arith.constant 0 : index
    %c0_8 = arith.constant 0 : index
    %21 = vector.load %arg5[%c0_7, %c0_8] : memref<1x128xf32, #tpu.memory_space<vmem>>, vector<1x128xf32>
    %cst_9 = arith.constant dense<0.000000e+00> : vector<128xf32>
    %22 = vector.multi_reduction <add>, %20, %cst_9 [0] : vector<1x128xf32> to vector<128xf32>
    %23 = vector.shape_cast %22 : vector<128xf32> to vector<1x128xf32>
    %24 = arith.addf %21, %23 : vector<1x128xf32>
    %c0_10 = arith.constant 0 : index
    %c0_11 = arith.constant 0 : index
    %25 = vector.load %arg5[%c0_10, %c0_11] : memref<1x128xf32, #tpu.memory_space<vmem>>, vector<1x128xf32>
    tpu.vector_store %arg5[%c0_10, %c0_11], %24 {strides = array<i32>} : memref<1x128xf32, #tpu.memory_space<vmem>>, vector<1x128xf32>,
    %26 = arith.extui %5 : i1 to i32
    %c0_i32_12 = arith.constant 0 : i32
    %27 = arith.cmpi ne, %26, %c0_i32_12 : i32
    scf.if %27 {
      %c0_13 = arith.constant 0 : index
      %c0_14 = arith.constant 0 : index
      %28 = vector.load %arg5[%c0_13, %c0_14] : memref<1x128xf32, #tpu.memory_space<vmem>>, vector<1x128xf32>
      %29 = vector.shape_cast %28 : vector<1x128xf32> to vector<1x1x128xf32>
      %cst_15 = arith.constant dense<0.000000e+00> : vector<1xf32>
      %30 = vector.multi_reduction <add>, %29, %cst_15 [1, 2] : vector<1x1x128xf32> to vector<1xf32>
      %31 = vector.shape_cast %30 : vector<1xf32> to vector<1x1x1xf32>
      %32 = vector.extract %31[0, 0, 0] : f32 from vector<1x1x1xf32>
      %33 = vector.broadcast %32 : f32 to vector<1x1xf32>
      %c0_16 = arith.constant 0 : index
      %c0_17 = arith.constant 0 : index
      %34 = vector.load %arg4[%c0_16, %c0_17] : memref<1x1xf32, #tpu.memory_space<vmem>>, vector<1x1xf32>
      tpu.vector_store %arg4[%c0_16, %c0_17], %33 {strides = array<i32>} : memref<1x1xf32, #tpu.memory_space<vmem>>, vector<1x1xf32>,
    } else {
    }
    return
  }
  func.func @transform_0(%arg0: i32, %arg1: i32, %arg2: i32) -> (i32, i32) {
    %c1_i32 = arith.constant 1 : i32
    %0 = arith.muli %arg0, %c1_i32 : i32
    %1 = arith.addi %0, %arg1 : i32
    %c0_i32 = arith.constant 0 : i32
    %2 = arith.minsi %1, %c0_i32 : i32
    %c0_i32_0 = arith.constant 0 : i32
    return %2, %arg2 : i32, i32
  }
  func.func @transform_1(%arg0: i32, %arg1: i32, %arg2: i32) -> (i32, i32) {
    %c0_i32 = arith.constant 0 : i32
    %c0_i32_0 = arith.constant 0 : i32
    return %arg0, %c0_i32 : i32, i32
  }
}

</mosaic_0001>

<llo_original>
// kernel: tpu_custom_call.1
$region0: #{tpu_custom_call.1}
  #allocation0 [shape = 'u32[]', space=smem, size = 0x4, offset = 0x4, fixed_abs, tag = 'smem constant byte address 0x4 - core index']
  #allocation1 [shape = 'u32[72,128]{1,0:T(1,128)}', space=vmem, size = 0x9000, scoped, tag = 'internal scratch']
  #allocation2 [shape = 'f32[1,128]{1,0:T(1,128)}', space=vmem, size = 0x200, scoped, tag = 'scratch operand']
  %s0 = inlined_call_operand.hbm [shape: f32[1,128], index: 0, kind: input, shape index: {}]
  %s1 = inlined_call_operand.hbm [shape: f32[1,1], index: 1, kind: output, shape index: {}]
  %s2 = sld [smem:[#allocation0]]
  $region26: #{tpu_custom_call.1} parent=0
    _
  %s4 = ssub.s32 1, %s2
  %s5 = scalar_select 0, %s4, %s2
  $region1: #{tpu_custom_call.1} parent=0
    #allocation3 [shape = 'u8[512]{0}', space=vmem, size = 0x400, scoped, tag = 'input window, operand 0, single buffered']
    #allocation4 [shape = 's32[1]{0}', space=sflag, size = 0x4, scoped, tag = 'scoped memory for tpu_custom_call.1']
    #allocation5 [shape = 's32[1]{0}', space=sflag, size = 0x4, scoped, tag = 'scoped memory for tpu_custom_call.1']
    #allocation6 [shape = 'u8[512]{0}', space=vmem, size = 0x400, scoped, tag = 'output window, operand 0, single buffered']
    %6 = vsyncpa [#allocation4], 0
    %7 = vsyncpa [#allocation5], 0
    // Predicated region
    $region2: #{tpu_custom_call.1} parent=1 // pred_check
      _
    $region3: #{tpu_custom_call.1} parent=1 // pred_check_branch
      %9 = sbr.rel (0) target = $region5
    $region4: #{tpu_custom_call.1} parent=1 // pred_region
      %s10 = sadd.s32 0, 0
      %p11 = scmp.lt.s32.totalorder %s10, 0
      %s12 = scalar_select %p11, %s10, 0
      %14 = vsyncadd [#allocation4], 0
      %s15 = scalar_lea.hbm %s0, %s12
      %s17 = sshll.u32 %s15, 4
      %s18 = int_to_ptr.hbm [resolvable:$true] %s17
      %s19 = sshll.u32 [#allocation3], 4
      %s20 = int_to_ptr.vmem [resolvable:$true] %s19
      %22 = dma.hbm_to_vmem [thread:$0]  %s18, 16, %s20, [#allocation4]
    $region5: #{tpu_custom_call.1} parent=1 // pred_fallthru
      _
    // Predicated region
    $region6: #{tpu_custom_call.1} parent=1 // pred_check
      _
    $region7: #{tpu_custom_call.1} parent=1 // pred_check_branch
      %24 = sbr.rel (0) target = $region9
    $region8: #{tpu_custom_call.1} parent=1 // pred_region
      %26 = dma.done [#allocation4], 16
    $region9: #{tpu_custom_call.1} parent=1 // pred_fallthru
      _
    %s27 = sadd.s32 0, 0
    %p28 = scmp.lt.s32.totalorder %s27, 0
    %s29 = scalar_select %p28, %s27, 0
    %p30 = scmp.eq.s32.totalorder 0, 0
    %p31 = scmp.eq.s32.totalorder 0, 0
    %p32 = pnand %p30, %p31
    %p33 = pneg %p32
    // Predicated region
    $region10: #{tpu_custom_call.1} parent=1 // pred_check
      _
    $region11: #{tpu_custom_call.1} parent=1 // pred_check_branch
      %35 = sbr.rel (%p32) target = $region13
    $region12: #{tpu_custom_call.1} parent=1 // pred_region
      %36 = vst [vmem:[#allocation2] sm:$0x1] 0.0
      %vm37 = vcmask 0
      %38 = vst.msk [vmem:[#allocation6] sm:$0x1] %vm37, 0.0
    $region13: #{tpu_custom_call.1} parent=1 // pred_fallthru
      _
    %s39 = sadd.s32 0, 0
    %v40 = vlaneseq
    %v41 = vshrl.u32 %v40, 7
    %v42 = vstv %s39
    %v43 = vadd.s32 %v42, %v41
    %vm44 = vcmp.lt.s32.totalorder %v43, 1
    %v45 = vld [vmem:[#allocation3] sm:$0x1]
    %v46 = vsel %vm44, 1, 0
    %vm47 = vcmp.eq.s32.totalorder %v46, 1
    %v48 = vsel %vm47, %v45, 0.0
    %v49 = vld [vmem:[#allocation2] sm:$0x1]
    %v50 = vadd.f32 %v48, 0.0
    %v51 = vadd.f32 %v49, %v50
    %52 = vst [vmem:[#allocation2] sm:$0x1] %v51
    // Predicated region
    $region14: #{tpu_custom_call.1} parent=1 // pred_check
      _
    $region15: #{tpu_custom_call.1} parent=1 // pred_check_branch
      %54 = sbr.rel (%p32) target = $region17
    $region16: #{tpu_custom_call.1} parent=1 // pred_region
      %v55 = vld [vmem:[#allocation2] sm:$0x1]
      %vm56 = vcmask 1040384
      %v57 = vsel %vm56, %v55, 0.0
      %58 = vadd.xlane.f32.xlu0 %v57
      %v59 = vpop.xlane.xlu0 %58
      %v60 = vrot.slane %v59, 4
      %v61 = vadd.f32 %v59, %v60
      %v62 = vrot.slane %v61, 2
      %v63 = vadd.f32 %v61, %v62
      %v64 = vrot.slane %v63, 1
      %v65 = vadd.f32 %v63, %v64
      %s66 = vtos %v65
      %v67 = vstv %s66
      %vm68 = vcmask 0
      %69 = vst.msk [vmem:[#allocation6] sm:$0x1] %vm68, %v67
    $region17: #{tpu_custom_call.1} parent=1 // pred_fallthru
      _
    // Predicated region
    $region18: #{tpu_custom_call.1} parent=1 // pred_check
      _
    $region19: #{tpu_custom_call.1} parent=1 // pred_check_branch
      %71 = sbr.rel (0) target = $region21
    $region20: #{tpu_custom_call.1} parent=1 // pred_region
      %73 = vsyncadd [#allocation5], 0
      %s75 = sshll.u32 [#allocation6], 4
      %s76 = int_to_ptr.vmem [resolvable:$true] %s75
      %s77 = sshll.u32 %s1, 4
      %s78 = int_to_ptr.hbm [resolvable:$true] %s77
      %80 = dma.vmem_to_hbm [thread:$0]  %s76, 16, %s78, [#allocation5]
    $region21: #{tpu_custom_call.1} parent=1 // pred_fallthru
      _
    // Predicated region
    $region22: #{tpu_custom_call.1} parent=1 // pred_check
      _
    $region23: #{tpu_custom_call.1} parent=1 // pred_check_branch
      %82 = sbr.rel (0) target = $region25
    $region24: #{tpu_custom_call.1} parent=1 // pred_region
      %84 = dma.done [#allocation5], 16
    $region25: #{tpu_custom_call.1} parent=1 // pred_fallthru
      _
    %85 = vsyncpa [#allocation4], 1
    %86 = vsyncpa [#allocation5], 1

</llo_original>
